<compile_context>
chip_gen: v5e
topology: v5e:2x2
jax: 0.10.0
libtpu: 0.0.40
codegen_flags: <defaults>
</compile_context>

<pallas_src>
import math

import jax
import jax.numpy as jnp
from jax import lax
from jax.experimental import pallas as pl
from jax.experimental.pallas import tpu as pltpu

_VMEM_LIMIT = 32 * 1024 * 1024  # fits v7x (64 MiB/TC) and v5e/v6e (128 MiB)


# -----------------------------------------------------------------------------
# Fused kernel: (1x1 conv + BN)  ->  n_out x (depthwise 3x3 conv + BN)
# -----------------------------------------------------------------------------
def _make_fused_kernel(H, W, n_out):
    def kernel(x_ref, w_ref, bl_ref, k_ref, b_ref, o_ref):
        # x_ref : (1, H*W, Cin)      token tile for one batch element (bf16/f32)
        # w_ref : (Cin, Cout)        1x1 conv weight, BN scale folded in
        # bl_ref: (1, Cout)          fused lateral bias (conv bias + BN), f32
        # k_ref : (n_out, 9, Cout)   depthwise taps (BN scale folded), row=dh*3+dw
        # b_ref : (n_out, Cout)      fused depthwise bias (conv bias + BN), f32
        # o_ref : (n_out, 1, H, W, Cout)
        Cout = o_ref.shape[-1]

        # ---- lateral 1x1 conv + BN: MXU dot with f32 accumulation ----
        lat = jnp.dot(x_ref[0], w_ref[...], preferred_element_type=jnp.float32)
        lat = (lat + bl_ref[...]).reshape(H, W, Cout)        # (H, W, Cout) f32

        # ---- depthwise 3x3, stride 1, pad 1: halo built in-kernel ----
        # H halo: zero-row concat along the major axis (cheap vreg moves).
        zrow = jnp.zeros((1, W, Cout), jnp.float32)
        xp = jnp.concatenate([zrow, lat, zrow], axis=0)      # (H+2, W, Cout)

        # W halo: sublane roll (XLU slot, overlaps the VPU FMAs) + border mask.
        # pltpu.roll needs a non-negative shift: roll by W-1 == roll by -1.
        col = lax.broadcasted_iota(jnp.int32, (1, W, 1), 1)
        x_wm1 = jnp.where(col >= 1,
                          pltpu.roll(xp, shift=1, axis=1), 0.0)        # x[:, w-1]
        x_wp1 = jnp.where(col <= W - 2,
                          pltpu.roll(xp, shift=W - 1, axis=1), 0.0)    # x[:, w+1]
        shifted = (x_wm1, xp, x_wp1)                         # indexed by dw=0,1,2

        k = k_ref[...]                                       # (n_out, 9, Cout)
        b = b_ref[...]                                       # (n_out, Cout)

        # o-innermost: each (dh, dw) window is formed ONCE and accumulated into
        # every output (9 window slices total instead of 9 * n_out).
        # NOTE(perf): on v6e/v7x the FMA chain could run in packed bf16; kept
        # f32 here for reference-exact accumulation.
        accs = [jnp.zeros((H, W, Cout), jnp.float32) for _ in range(n_out)]
        for dw in range(3):
            xs = shifted[dw]
            for dh in range(3):
                win = xs[dh:dh + H]                          # (H, W, Cout)
                for o in range(n_out):
                    tap = k[o, dh * 3 + dw].reshape(1, 1, Cout)
                    accs[o] = accs[o] + win * tap
        for o in range(n_out):
            o_ref[o, 0] = accs[o] + b[o].reshape(1, 1, Cout)

    return kernel


def fused_lateral_dw(x_tokens, H, W, w_lat, b_lat, k_all, b_all, use_bf16=True):
    """x_tokens: (B, H*W, Cin) -> (n_out, B, H, W, Cout), all convs fused."""
    B, HW, Cin = x_tokens.shape
    assert HW == H * W
    Cout = w_lat.shape[1]
    n_out = k_all.shape[0]

    in_dt = jnp.bfloat16 if use_bf16 else jnp.float32
    x = x_tokens.astype(in_dt)
    w = w_lat.astype(in_dt)
    bl = b_lat.reshape(1, Cout).astype(jnp.float32)
    k = k_all.astype(jnp.float32)
    bo = b_all.astype(jnp.float32)

    return pl.pallas_call(
        _make_fused_kernel(H, W, n_out),
        out_shape=jax.ShapeDtypeStruct((n_out, B, H, W, Cout), jnp.float32),
        grid_spec=pltpu.PrefetchScalarGridSpec(
            num_scalar_prefetch=0,
            grid=(B,),
            in_specs=[
                pl.BlockSpec((1, HW, Cin), lambda b: (b, 0, 0)),
                pl.BlockSpec((Cin, Cout), lambda b: (0, 0)),
                pl.BlockSpec((1, Cout), lambda b: (0, 0)),
                pl.BlockSpec((n_out, 9, Cout), lambda b: (0, 0, 0)),
                pl.BlockSpec((n_out, Cout), lambda b: (0, 0)),
            ],
            out_specs=pl.BlockSpec((n_out, 1, H, W, Cout),
                                   lambda b: (0, b, 0, 0, 0)),
        ),
        compiler_params=pltpu.CompilerParams(
            dimension_semantics=("parallel",),
            vmem_limit_bytes=_VMEM_LIMIT),
    )(x, w, bl, k, bo)


# -----------------------------------------------------------------------------
# Parameter construction (shapes follow the PyTorch __init__ / init_weights)
# -----------------------------------------------------------------------------
def _fold_bn(conv_bias, gamma, beta, mean, var, eps=1e-5):
    scale = gamma / jnp.sqrt(var + eps)
    bias = (conv_bias - mean) * scale + beta
    return scale, bias


def init_vit_neck1_params(key, in_channels, out_channels, scales):
    num_outs = len(scales)
    params = {"lateral": [], "output": []}

    for cin in in_channels:
        key, k1, k2, k3, k4 = jax.random.split(key, 5)
        # Conv2d(cin, cout, k=1): xavier_uniform (gain=1), bias uniform[0,1)
        limit = math.sqrt(6.0 / (cin + out_channels))
        w_io = jax.random.uniform(k1, (cin, out_channels), jnp.float32,
                                  -limit, limit)              # (Cin, Cout)
        b = jax.random.uniform(k2, (out_channels,), jnp.float32, 0.0, 1.0)
        gamma = jnp.ones((out_channels,), jnp.float32)
        beta = jnp.zeros((out_channels,), jnp.float32)
        mean = 0.1 * jax.random.normal(k3, (out_channels,), jnp.float32)
        var = jax.random.uniform(k4, (out_channels,), jnp.float32, 0.5, 1.5)
        params["lateral"].append((w_io, b, gamma, beta, mean, var))

    for _ in range(num_outs):
        key, k1, k2, k3, k4 = jax.random.split(key, 5)
        # Conv2d(cout, cout, k=3, groups=cout): per-group fan_in = fan_out = 9
        limit = math.sqrt(6.0 / (9 + 9))
        k9c = jax.random.uniform(k1, (9, out_channels), jnp.float32,
                                 -limit, limit)               # row = dh*3+dw
        b = jax.random.uniform(k2, (out_channels,), jnp.float32, 0.0, 1.0)
        gamma = jnp.ones((out_channels,), jnp.float32)
        beta = jnp.zeros((out_channels,), jnp.float32)
        mean = 0.1 * jax.random.normal(k3, (out_channels,), jnp.float32)
        var = jax.random.uniform(k4, (out_channels,), jnp.float32, 0.5, 1.5)
        params["output"].append((k9c, b, gamma, beta, mean, var))

    return params


# -----------------------------------------------------------------------------
# Forward (matches ViTNeck1.forward)
# -----------------------------------------------------------------------------
def vit_neck1_forward(params, inputs, scales, cls_token=True,
                      channels_last=False, use_bf16=True):
    num_outs = len(scales)
    assert len(inputs) == len(params["lateral"])

    # tokens -> (B, H*W, Cin); channels stay last for the kernels
    feats, hw = [], []
    for feat in inputs:
        if cls_token:
            feat = feat[:, 1:, :]
        _, n_tok, _ = feat.shape
        h = w = int(math.sqrt(n_tok))
        assert h * w == n_tok, "ViTNeck1 expects a square token grid"
        feats.append(feat)
        hw.append((h, w))

    # Fold BN into the depthwise taps / biases (one-time constant transform).
    folded_out = []
    for (k9c, b, gamma, beta, mean, var) in params["output"]:
        scale, bias = _fold_bn(b, gamma, beta, mean, var)
        folded_out.append((k9c * scale[None, :], bias))

    # NOTE: the reference computes F.interpolate(feat, scale_factor=out_scale)
    # into x_resize and never uses it — intentionally omitted (dead code).
    outs_nhwc = []
    if len(feats) == 1:
        # All num_outs output convs consume the same lateral feature: fuse the
        # lateral matmul and every depthwise conv into ONE kernel — the input
        # is read from HBM once and the lateral never hits HBM at all.
        (w_io, b, gamma, beta, mean, var) = params["lateral"][0]
        scale, bias = _fold_bn(b, gamma, beta, mean, var)
        w_folded = w_io * scale[None, :]
        k_all = jnp.stack([kf for (kf, _) in folded_out], axis=0)
        b_all = jnp.stack([bf for (_, bf) in folded_out], axis=0)
        h, w = hw[0]
        stacked = fused_lateral_dw(feats[0], h, w, w_folded, bias,
                                   k_all, b_all, use_bf16=use_bf16)
        outs_nhwc = [stacked[o] for o in range(num_outs)]
    else:
        # Reference zips inputs/scales/output_convs; require equal lengths so
        # nothing is silently truncated.
        assert len(feats) == num_outs, \
            "with multiple inputs, len(inputs) must equal len(scales)"
        for feat, (h, w), lat_p, (kf, bf) in zip(feats, hw,
                                                 params["lateral"], folded_out):
            (w_io, b, gamma, beta, mean, var) = lat_p
            scale, bias = _fold_bn(b, gamma, beta, mean, var)
            w_folded = w_io * scale[None, :]
            stacked = fused_lateral_dw(feat, h, w, w_folded, bias,
                                       kf[None], bf[None], use_bf16=use_bf16)
            outs_nhwc.append(stacked[0])

    if channels_last:
        return tuple(outs_nhwc)     # NHWC: avoids an extra HBM pass per output
    # NCHW to match the PyTorch reference (costs one XLA transpose each).
    return tuple(jnp.transpose(o, (0, 3, 1, 2)) for o in outs_nhwc)


# -----------------------------------------------------------------------------
# Pure-JAX reference (no Pallas) for numerical validation of the demo config.
# -----------------------------------------------------------------------------
def _reference_forward(params, x_tokens, scales, cls_token=True, use_bf16=True):
    feat = x_tokens[:, 1:, :] if cls_token else x_tokens
    B, n_tok, _ = feat.shape
    h = w = int(math.sqrt(n_tok))

    (w_io, b, gamma, beta, mean, var) = params["lateral"][0]
    scale, bias = _fold_bn(b, gamma, beta, mean, var)
    wf = w_io * scale[None, :]
    dt = jnp.bfloat16 if use_bf16 else jnp.float32
    lat = jnp.einsum("bnc,cd->bnd", feat.astype(dt), wf.astype(dt),
                     preferred_element_type=jnp.float32)
    lat = (lat + bias[None, None, :]).reshape(B, h, w, -1)
    latp = jnp.pad(lat, ((0, 0), (1, 1), (1, 1), (0, 0)))

    outs = []
    for (k9c, bb, gamma, beta, mean, var) in params["output"]:
        scale, bias2 = _fold_bn(bb, gamma, beta, mean, var)
        kf = k9c * scale[None, :]
        acc = jnp.zeros_like(lat)
        for dh in range(3):
            for dw in range(3):
                acc = acc + latp[:, dh:dh + h, dw:dw + w, :] * \
                      kf[dh * 3 + dw][None, None, None, :]
        outs.append(jnp.transpose(acc + bias2[None, None, None, :],
                                  (0, 3, 1, 2)))
    return tuple(outs)


# -----------------------------------------------------------------------------
if __name__ == "__main__":
    key = jax.random.PRNGKey(0)

    # out_channels=128 keeps every vreg / store lane-dense on TPU.
    in_channels = [32]
    out_channels = 128
    scales = [4, 2, 1]
    B, H, W = 2, 8, 8
    n_tokens = H * W + 1            # +1 cls token

    key, kp, kx = jax.random.split(key, 3)
    params = init_vit_neck1_params(kp, in_channels, out_channels, scales)
    x = jax.random.normal(kx, (B, n_tokens, in_channels[0]), jnp.float32)

    outs = vit_neck1_forward(params, [x], scales, cls_token=True)
    outs = jax.block_until_ready(outs)

    expected = (B, out_channels, H, W)
    assert len(outs) == len(scales)
    refs = _reference_forward(params, x, scales, cls_token=True)
    for o, r in zip(outs, refs):
        assert o.shape == expected, (o.shape, expected)
        assert bool(jnp.all(jnp.isfinite(o)))
        max_err = float(jnp.max(jnp.abs(o - r)))
        assert max_err < 5e-2, f"mismatch vs reference: max abs err {max_err}"

    print("KERNEL_OK")
</pallas_src>

<mosaic_0001>
module attributes {stable_mosaic.version = 11 : i64} {
  func.func @kernel(%arg0: i32, %arg1: memref<1x64x32xbf16, #tpu.memory_space<vmem>>, %arg2: memref<32x128xbf16, #tpu.memory_space<vmem>>, %arg3: memref<1x128xf32, #tpu.memory_space<vmem>>, %arg4: memref<3x9x128xf32, #tpu.memory_space<vmem>>, %arg5: memref<3x128xf32, #tpu.memory_space<vmem>>, %arg6: memref<3x1x8x8x128xf32, #tpu.memory_space<vmem>>) attributes {dimension_semantics = [#tpu.dimension_semantics<parallel>], iteration_bounds = array<i64: 2>, scalar_prefetch = 0 : i64, scratch_operands = 0 : i64, tpu.core_type = #tpu.core_type<tc>, window_params = [{transform_indices = @transform_0, window_bounds = array<i64: 1, 64, 32>}, {pipeline_mode = #tpu.pipeline_mode<synchronous>, transform_indices = @transform_1, window_bounds = array<i64: 32, 128>}, {pipeline_mode = #tpu.pipeline_mode<synchronous>, transform_indices = @transform_2, window_bounds = array<i64: 1, 128>}, {pipeline_mode = #tpu.pipeline_mode<synchronous>, transform_indices = @transform_3, window_bounds = array<i64: 3, 9, 128>}, {pipeline_mode = #tpu.pipeline_mode<synchronous>, transform_indices = @transform_4, window_bounds = array<i64: 3, 128>}, {transform_indices = @transform_5, window_bounds = array<i64: 3, 1, 8, 8, 128>}]} {
    %c0 = arith.constant 0 : index
    %c0_0 = arith.constant 0 : index
    %c0_1 = arith.constant 0 : index
    %0 = vector.load %arg1[%c0, %c0_0, %c0_1] : memref<1x64x32xbf16, #tpu.memory_space<vmem>>, vector<1x64x32xbf16>
    %1 = vector.shape_cast %0 : vector<1x64x32xbf16> to vector<64x32xbf16>
    %c0_2 = arith.constant 0 : index
    %c0_3 = arith.constant 0 : index
    %2 = vector.load %arg2[%c0_2, %c0_3] : memref<32x128xbf16, #tpu.memory_space<vmem>>, vector<32x128xbf16>
    %cst = arith.constant dense<0.000000e+00> : vector<64x128xf32>
    %3 = tpu.matmul %1, %2, %cst {dimension_numbers = #tpu.dot_dimension_numbers<[1], [0], [0], [1], [0, 0, 1, 1], [], []>} : vector<64x32xbf16>, vector<32x128xbf16>, vector<64x128xf32> -> vector<64x128xf32>
    %c0_4 = arith.constant 0 : index
    %c0_5 = arith.constant 0 : index
    %4 = vector.load %arg3[%c0_4, %c0_5] : memref<1x128xf32, #tpu.memory_space<vmem>>, vector<1x128xf32>
    %5 = vector.broadcast %4 : vector<1x128xf32> to vector<64x128xf32>
    %6 = arith.addf %3, %5 : vector<64x128xf32>
    %7 = vector.shape_cast %6 : vector<64x128xf32> to vector<8x8x128xf32>
    %cst_6 = arith.constant 0.000000e+00 : f32
    %8 = vector.broadcast %cst_6 : f32 to vector<1x8x128xf32>
    %9 = tpu.concatenate %8, %7, %8 in 0 : vector<1x8x128xf32>, vector<8x8x128xf32>, vector<1x8x128xf32> -> vector<10x8x128xf32>
    %10 = tpu.iota {dimensions = array<i32: 1>} : vector<1x8x1xi32>
    %c1_i32 = arith.constant 1 : i32
    %11 = vector.broadcast %c1_i32 : i32 to vector<1x8x1xi32>
    %12 = arith.cmpi sge, %10, %11 : vector<1x8x1xi32>
    %c1_i32_7 = arith.constant 1 : i32
    %13 = tpu.dynamic_rotate %9 by %c1_i32_7 dim 1 : vector<10x8x128xf32>, i32 -> vector<10x8x128xf32>
    %cst_8 = arith.constant 0.000000e+00 : f32
    %14 = vector.shape_cast %12 : vector<1x8x1xi1> to vector<1x8x1xi1>
    %15 = vector.broadcast %14 : vector<1x8x1xi1> to vector<10x8x128xi1>
    %16 = vector.broadcast %cst_8 : f32 to vector<10x8x128xf32>
    %17 = arith.select %15, %13, %16 : vector<10x8x128xi1>, vector<10x8x128xf32>
    %c6_i32 = arith.constant 6 : i32
    %18 = vector.broadcast %c6_i32 : i32 to vector<1x8x1xi32>
    %19 = arith.cmpi sle, %10, %18 : vector<1x8x1xi32>
    %c7_i32 = arith.constant 7 : i32
    %20 = tpu.dynamic_rotate %9 by %c7_i32 dim 1 : vector<10x8x128xf32>, i32 -> vector<10x8x128xf32>
    %cst_9 = arith.constant 0.000000e+00 : f32
    %21 = vector.shape_cast %19 : vector<1x8x1xi1> to vector<1x8x1xi1>
    %22 = vector.broadcast %21 : vector<1x8x1xi1> to vector<10x8x128xi1>
    %23 = vector.broadcast %cst_9 : f32 to vector<10x8x128xf32>
    %24 = arith.select %22, %20, %23 : vector<10x8x128xi1>, vector<10x8x128xf32>
    %c0_10 = arith.constant 0 : index
    %c0_11 = arith.constant 0 : index
    %c0_12 = arith.constant 0 : index
    %25 = vector.load %arg4[%c0_10, %c0_11, %c0_12] : memref<3x9x128xf32, #tpu.memory_space<vmem>>, vector<3x9x128xf32>
    %c0_13 = arith.constant 0 : index
    %c0_14 = arith.constant 0 : index
    %26 = vector.load %arg5[%c0_13, %c0_14] : memref<3x128xf32, #tpu.memory_space<vmem>>, vector<3x128xf32>
    %cst_15 = arith.constant 0.000000e+00 : f32
    %27 = vector.broadcast %cst_15 : f32 to vector<8x8x128xf32>
    %cst_16 = arith.constant 0.000000e+00 : f32
    %28 = vector.broadcast %cst_16 : f32 to vector<8x8x128xf32>
    %cst_17 = arith.constant 0.000000e+00 : f32
    %29 = vector.broadcast %cst_17 : f32 to vector<8x8x128xf32>
    %30 = vector.extract_strided_slice %17 {offsets = [0, 0, 0], sizes = [8, 8, 128], strides = [1, 1, 1]} : vector<10x8x128xf32> to vector<8x8x128xf32>
    %31 = vector.extract_strided_slice %25 {offsets = [0, 0, 0], sizes = [1, 1, 128], strides = [1, 1, 1]} : vector<3x9x128xf32> to vector<1x1x128xf32>
    %32 = vector.shape_cast %31 : vector<1x1x128xf32> to vector<128xf32>
    %33 = vector.shape_cast %32 : vector<128xf32> to vector<1x1x128xf32>
    %34 = vector.broadcast %33 : vector<1x1x128xf32> to vector<8x8x128xf32>
    %35 = arith.mulf %30, %34 : vector<8x8x128xf32>
    %36 = arith.addf %27, %35 : vector<8x8x128xf32>
    %37 = vector.extract_strided_slice %25 {offsets = [1, 0, 0], sizes = [1, 1, 128], strides = [1, 1, 1]} : vector<3x9x128xf32> to vector<1x1x128xf32>
    %38 = vector.shape_cast %37 : vector<1x1x128xf32> to vector<128xf32>
    %39 = vector.shape_cast %38 : vector<128xf32> to vector<1x1x128xf32>
    %40 = vector.broadcast %39 : vector<1x1x128xf32> to vector<8x8x128xf32>
    %41 = arith.mulf %30, %40 : vector<8x8x128xf32>
    %42 = arith.addf %28, %41 : vector<8x8x128xf32>
    %43 = vector.extract_strided_slice %25 {offsets = [2, 0, 0], sizes = [1, 1, 128], strides = [1, 1, 1]} : vector<3x9x128xf32> to vector<1x1x128xf32>
    %44 = vector.shape_cast %43 : vector<1x1x128xf32> to vector<128xf32>
    %45 = vector.shape_cast %44 : vector<128xf32> to vector<1x1x128xf32>
    %46 = vector.broadcast %45 : vector<1x1x128xf32> to vector<8x8x128xf32>
    %47 = arith.mulf %30, %46 : vector<8x8x128xf32>
    %48 = arith.addf %29, %47 : vector<8x8x128xf32>
    %49 = vector.extract_strided_slice %17 {offsets = [1, 0, 0], sizes = [8, 8, 128], strides = [1, 1, 1]} : vector<10x8x128xf32> to vector<8x8x128xf32>
    %50 = vector.extract_strided_slice %25 {offsets = [0, 3, 0], sizes = [1, 1, 128], strides = [1, 1, 1]} : vector<3x9x128xf32> to vector<1x1x128xf32>
    %51 = vector.shape_cast %50 : vector<1x1x128xf32> to vector<128xf32>
    %52 = vector.shape_cast %51 : vector<128xf32> to vector<1x1x128xf32>
    %53 = vector.broadcast %52 : vector<1x1x128xf32> to vector<8x8x128xf32>
    %54 = arith.mulf %49, %53 : vector<8x8x128xf32>
    %55 = arith.addf %36, %54 : vector<8x8x128xf32>
    %56 = vector.extract_strided_slice %25 {offsets = [1, 3, 0], sizes = [1, 1, 128], strides = [1, 1, 1]} : vector<3x9x128xf32> to vector<1x1x128xf32>
    %57 = vector.shape_cast %56 : vector<1x1x128xf32> to vector<128xf32>
    %58 = vector.shape_cast %57 : vector<128xf32> to vector<1x1x128xf32>
    %59 = vector.broadcast %58 : vector<1x1x128xf32> to vector<8x8x128xf32>
    %60 = arith.mulf %49, %59 : vector<8x8x128xf32>
    %61 = arith.addf %42, %60 : vector<8x8x128xf32>
    %62 = vector.extract_strided_slice %25 {offsets = [2, 3, 0], sizes = [1, 1, 128], strides = [1, 1, 1]} : vector<3x9x128xf32> to vector<1x1x128xf32>
    %63 = vector.shape_cast %62 : vector<1x1x128xf32> to vector<128xf32>
    %64 = vector.shape_cast %63 : vector<128xf32> to vector<1x1x128xf32>
    %65 = vector.broadcast %64 : vector<1x1x128xf32> to vector<8x8x128xf32>
    %66 = arith.mulf %49, %65 : vector<8x8x128xf32>
    %67 = arith.addf %48, %66 : vector<8x8x128xf32>
    %68 = vector.extract_strided_slice %17 {offsets = [2, 0, 0], sizes = [8, 8, 128], strides = [1, 1, 1]} : vector<10x8x128xf32> to vector<8x8x128xf32>
    %69 = vector.extract_strided_slice %25 {offsets = [0, 6, 0], sizes = [1, 1, 128], strides = [1, 1, 1]} : vector<3x9x128xf32> to vector<1x1x128xf32>
    %70 = vector.shape_cast %69 : vector<1x1x128xf32> to vector<128xf32>
    %71 = vector.shape_cast %70 : vector<128xf32> to vector<1x1x128xf32>
    %72 = vector.broadcast %71 : vector<1x1x128xf32> to vector<8x8x128xf32>
    %73 = arith.mulf %68, %72 : vector<8x8x128xf32>
    %74 = arith.addf %55, %73 : vector<8x8x128xf32>
    %75 = vector.extract_strided_slice %25 {offsets = [1, 6, 0], sizes = [1, 1, 128], strides = [1, 1, 1]} : vector<3x9x128xf32> to vector<1x1x128xf32>
    %76 = vector.shape_cast %75 : vector<1x1x128xf32> to vector<128xf32>
    %77 = vector.shape_cast %76 : vector<128xf32> to vector<1x1x128xf32>
    %78 = vector.broadcast %77 : vector<1x1x128xf32> to vector<8x8x128xf32>
    %79 = arith.mulf %68, %78 : vector<8x8x128xf32>
    %80 = arith.addf %61, %79 : vector<8x8x128xf32>
    %81 = vector.extract_strided_slice %25 {offsets = [2, 6, 0], sizes = [1, 1, 128], strides = [1, 1, 1]} : vector<3x9x128xf32> to vector<1x1x128xf32>
    %82 = vector.shape_cast %81 : vector<1x1x128xf32> to vector<128xf32>
    %83 = vector.shape_cast %82 : vector<128xf32> to vector<1x1x128xf32>
    %84 = vector.broadcast %83 : vector<1x1x128xf32> to vector<8x8x128xf32>
    %85 = arith.mulf %68, %84 : vector<8x8x128xf32>
    %86 = arith.addf %67, %85 : vector<8x8x128xf32>
    %87 = vector.extract_strided_slice %9 {offsets = [0, 0, 0], sizes = [8, 8, 128], strides = [1, 1, 1]} : vector<10x8x128xf32> to vector<8x8x128xf32>
    %88 = vector.extract_strided_slice %25 {offsets = [0, 1, 0], sizes = [1, 1, 128], strides = [1, 1, 1]} : vector<3x9x128xf32> to vector<1x1x128xf32>
    %89 = vector.shape_cast %88 : vector<1x1x128xf32> to vector<128xf32>
    %90 = vector.shape_cast %89 : vector<128xf32> to vector<1x1x128xf32>
    %91 = vector.broadcast %90 : vector<1x1x128xf32> to vector<8x8x128xf32>
    %92 = arith.mulf %87, %91 : vector<8x8x128xf32>
    %93 = arith.addf %74, %92 : vector<8x8x128xf32>
    %94 = vector.extract_strided_slice %25 {offsets = [1, 1, 0], sizes = [1, 1, 128], strides = [1, 1, 1]} : vector<3x9x128xf32> to vector<1x1x128xf32>
    %95 = vector.shape_cast %94 : vector<1x1x128xf32> to vector<128xf32>
    %96 = vector.shape_cast %95 : vector<128xf32> to vector<1x1x128xf32>
    %97 = vector.broadcast %96 : vector<1x1x128xf32> to vector<8x8x128xf32>
    %98 = arith.mulf %87, %97 : vector<8x8x128xf32>
    %99 = arith.addf %80, %98 : vector<8x8x128xf32>
    %100 = vector.extract_strided_slice %25 {offsets = [2, 1, 0], sizes = [1, 1, 128], strides = [1, 1, 1]} : vector<3x9x128xf32> to vector<1x1x128xf32>
    %101 = vector.shape_cast %100 : vector<1x1x128xf32> to vector<128xf32>
    %102 = vector.shape_cast %101 : vector<128xf32> to vector<1x1x128xf32>
    %103 = vector.broadcast %102 : vector<1x1x128xf32> to vector<8x8x128xf32>
    %104 = arith.mulf %87, %103 : vector<8x8x128xf32>
    %105 = arith.addf %86, %104 : vector<8x8x128xf32>
    %106 = vector.extract_strided_slice %9 {offsets = [1, 0, 0], sizes = [8, 8, 128], strides = [1, 1, 1]} : vector<10x8x128xf32> to vector<8x8x128xf32>
    %107 = vector.extract_strided_slice %25 {offsets = [0, 4, 0], sizes = [1, 1, 128], strides = [1, 1, 1]} : vector<3x9x128xf32> to vector<1x1x128xf32>
    %108 = vector.shape_cast %107 : vector<1x1x128xf32> to vector<128xf32>
    %109 = vector.shape_cast %108 : vector<128xf32> to vector<1x1x128xf32>
    %110 = vector.broadcast %109 : vector<1x1x128xf32> to vector<8x8x128xf32>
    %111 = arith.mulf %106, %110 : vector<8x8x128xf32>
    %112 = arith.addf %93, %111 : vector<8x8x128xf32>
    %113 = vector.extract_strided_slice %25 {offsets = [1, 4, 0], sizes = [1, 1, 128], strides = [1, 1, 1]} : vector<3x9x128xf32> to vector<1x1x128xf32>
    %114 = vector.shape_cast %113 : vector<1x1x128xf32> to vector<128xf32>
    %115 = vector.shape_cast %114 : vector<128xf32> to vector<1x1x128xf32>
    %116 = vector.broadcast %115 : vector<1x1x128xf32> to vector<8x8x128xf32>
    %117 = arith.mulf %106, %116 : vector<8x8x128xf32>
    %118 = arith.addf %99, %117 : vector<8x8x128xf32>
    %119 = vector.extract_strided_slice %25 {offsets = [2, 4, 0], sizes = [1, 1, 128], strides = [1, 1, 1]} : vector<3x9x128xf32> to vector<1x1x128xf32>
    %120 = vector.shape_cast %119 : vector<1x1x128xf32> to vector<128xf32>
    %121 = vector.shape_cast %120 : vector<128xf32> to vector<1x1x128xf32>
    %122 = vector.broadcast %121 : vector<1x1x128xf32> to vector<8x8x128xf32>
    %123 = arith.mulf %106, %122 : vector<8x8x128xf32>
    %124 = arith.addf %105, %123 : vector<8x8x128xf32>
    %125 = vector.extract_strided_slice %9 {offsets = [2, 0, 0], sizes = [8, 8, 128], strides = [1, 1, 1]} : vector<10x8x128xf32> to vector<8x8x128xf32>
    %126 = vector.extract_strided_slice %25 {offsets = [0, 7, 0], sizes = [1, 1, 128], strides = [1, 1, 1]} : vector<3x9x128xf32> to vector<1x1x128xf32>
    %127 = vector.shape_cast %126 : vector<1x1x128xf32> to vector<128xf32>
    %128 = vector.shape_cast %127 : vector<128xf32> to vector<1x1x128xf32>
    %129 = vector.broadcast %128 : vector<1x1x128xf32> to vector<8x8x128xf32>
    %130 = arith.mulf %125, %129 : vector<8x8x128xf32>
    %131 = arith.addf %112, %130 : vector<8x8x128xf32>
    %132 = vector.extract_strided_slice %25 {offsets = [1, 7, 0], sizes = [1, 1, 128], strides = [1, 1, 1]} : vector<3x9x128xf32> to vector<1x1x128xf32>
    %133 = vector.shape_cast %132 : vector<1x1x128xf32> to vector<128xf32>
    %134 = vector.shape_cast %133 : vector<128xf32> to vector<1x1x128xf32>
    %135 = vector.broadcast %134 : vector<1x1x128xf32> to vector<8x8x128xf32>
    %136 = arith.mulf %125, %135 : vector<8x8x128xf32>
    %137 = arith.addf %118, %136 : vector<8x8x128xf32>
    %138 = vector.extract_strided_slice %25 {offsets = [2, 7, 0], sizes = [1, 1, 128], strides = [1, 1, 1]} : vector<3x9x128xf32> to vector<1x1x128xf32>
    %139 = vector.shape_cast %138 : vector<1x1x128xf32> to vector<128xf32>
    %140 = vector.shape_cast %139 : vector<128xf32> to vector<1x1x128xf32>
    %141 = vector.broadcast %140 : vector<1x1x128xf32> to vector<8x8x128xf32>
    %142 = arith.mulf %125, %141 : vector<8x8x128xf32>
    %143 = arith.addf %124, %142 : vector<8x8x128xf32>
    %144 = vector.extract_strided_slice %24 {offsets = [0, 0, 0], sizes = [8, 8, 128], strides = [1, 1, 1]} : vector<10x8x128xf32> to vector<8x8x128xf32>
    %145 = vector.extract_strided_slice %25 {offsets = [0, 2, 0], sizes = [1, 1, 128], strides = [1, 1, 1]} : vector<3x9x128xf32> to vector<1x1x128xf32>
    %146 = vector.shape_cast %145 : vector<1x1x128xf32> to vector<128xf32>
    %147 = vector.shape_cast %146 : vector<128xf32> to vector<1x1x128xf32>
    %148 = vector.broadcast %147 : vector<1x1x128xf32> to vector<8x8x128xf32>
    %149 = arith.mulf %144, %148 : vector<8x8x128xf32>
    %150 = arith.addf %131, %149 : vector<8x8x128xf32>
    %151 = vector.extract_strided_slice %25 {offsets = [1, 2, 0], sizes = [1, 1, 128], strides = [1, 1, 1]} : vector<3x9x128xf32> to vector<1x1x128xf32>
    %152 = vector.shape_cast %151 : vector<1x1x128xf32> to vector<128xf32>
    %153 = vector.shape_cast %152 : vector<128xf32> to vector<1x1x128xf32>
    %154 = vector.broadcast %153 : vector<1x1x128xf32> to vector<8x8x128xf32>
    %155 = arith.mulf %144, %154 : vector<8x8x128xf32>
    %156 = arith.addf %137, %155 : vector<8x8x128xf32>
    %157 = vector.extract_strided_slice %25 {offsets = [2, 2, 0], sizes = [1, 1, 128], strides = [1, 1, 1]} : vector<3x9x128xf32> to vector<1x1x128xf32>
    %158 = vector.shape_cast %157 : vector<1x1x128xf32> to vector<128xf32>
    %159 = vector.shape_cast %158 : vector<128xf32> to vector<1x1x128xf32>
    %160 = vector.broadcast %159 : vector<1x1x128xf32> to vector<8x8x128xf32>
    %161 = arith.mulf %144, %160 : vector<8x8x128xf32>
    %162 = arith.addf %143, %161 : vector<8x8x128xf32>
    %163 = vector.extract_strided_slice %24 {offsets = [1, 0, 0], sizes = [8, 8, 128], strides = [1, 1, 1]} : vector<10x8x128xf32> to vector<8x8x128xf32>
    %164 = vector.extract_strided_slice %25 {offsets = [0, 5, 0], sizes = [1, 1, 128], strides = [1, 1, 1]} : vector<3x9x128xf32> to vector<1x1x128xf32>
    %165 = vector.shape_cast %164 : vector<1x1x128xf32> to vector<128xf32>
    %166 = vector.shape_cast %165 : vector<128xf32> to vector<1x1x128xf32>
    %167 = vector.broadcast %166 : vector<1x1x128xf32> to vector<8x8x128xf32>
    %168 = arith.mulf %163, %167 : vector<8x8x128xf32>
    %169 = arith.addf %150, %168 : vector<8x8x128xf32>
    %170 = vector.extract_strided_slice %25 {offsets = [1, 5, 0], sizes = [1, 1, 128], strides = [1, 1, 1]} : vector<3x9x128xf32> to vector<1x1x128xf32>
    %171 = vector.shape_cast %170 : vector<1x1x128xf32> to vector<128xf32>
    %172 = vector.shape_cast %171 : vector<128xf32> to vector<1x1x128xf32>
    %173 = vector.broadcast %172 : vector<1x1x128xf32> to vector<8x8x128xf32>
    %174 = arith.mulf %163, %173 : vector<8x8x128xf32>
    %175 = arith.addf %156, %174 : vector<8x8x128xf32>
    %176 = vector.extract_strided_slice %25 {offsets = [2, 5, 0], sizes = [1, 1, 128], strides = [1, 1, 1]} : vector<3x9x128xf32> to vector<1x1x128xf32>
    %177 = vector.shape_cast %176 : vector<1x1x128xf32> to vector<128xf32>
    %178 = vector.shape_cast %177 : vector<128xf32> to vector<1x1x128xf32>
    %179 = vector.broadcast %178 : vector<1x1x128xf32> to vector<8x8x128xf32>
    %180 = arith.mulf %163, %179 : vector<8x8x128xf32>
    %181 = arith.addf %162, %180 : vector<8x8x128xf32>
    %182 = vector.extract_strided_slice %24 {offsets = [2, 0, 0], sizes = [8, 8, 128], strides = [1, 1, 1]} : vector<10x8x128xf32> to vector<8x8x128xf32>
    %183 = vector.extract_strided_slice %25 {offsets = [0, 8, 0], sizes = [1, 1, 128], strides = [1, 1, 1]} : vector<3x9x128xf32> to vector<1x1x128xf32>
    %184 = vector.shape_cast %183 : vector<1x1x128xf32> to vector<128xf32>
    %185 = vector.shape_cast %184 : vector<128xf32> to vector<1x1x128xf32>
    %186 = vector.broadcast %185 : vector<1x1x128xf32> to vector<8x8x128xf32>
    %187 = arith.mulf %182, %186 : vector<8x8x128xf32>
    %188 = arith.addf %169, %187 : vector<8x8x128xf32>
    %189 = vector.extract_strided_slice %25 {offsets = [1, 8, 0], sizes = [1, 1, 128], strides = [1, 1, 1]} : vector<3x9x128xf32> to vector<1x1x128xf32>
    %190 = vector.shape_cast %189 : vector<1x1x128xf32> to vector<128xf32>
    %191 = vector.shape_cast %190 : vector<128xf32> to vector<1x1x128xf32>
    %192 = vector.broadcast %191 : vector<1x1x128xf32> to vector<8x8x128xf32>
    %193 = arith.mulf %182, %192 : vector<8x8x128xf32>
    %194 = arith.addf %175, %193 : vector<8x8x128xf32>
    %195 = vector.extract_strided_slice %25 {offsets = [2, 8, 0], sizes = [1, 1, 128], strides = [1, 1, 1]} : vector<3x9x128xf32> to vector<1x1x128xf32>
    %196 = vector.shape_cast %195 : vector<1x1x128xf32> to vector<128xf32>
    %197 = vector.shape_cast %196 : vector<128xf32> to vector<1x1x128xf32>
    %198 = vector.broadcast %197 : vector<1x1x128xf32> to vector<8x8x128xf32>
    %199 = arith.mulf %182, %198 : vector<8x8x128xf32>
    %200 = arith.addf %181, %199 : vector<8x8x128xf32>
    %201 = vector.extract_strided_slice %26 {offsets = [0, 0], sizes = [1, 128], strides = [1, 1]} : vector<3x128xf32> to vector<1x128xf32>
    %202 = vector.shape_cast %201 : vector<1x128xf32> to vector<128xf32>
    %203 = vector.shape_cast %202 : vector<128xf32> to vector<1x1x128xf32>
    %204 = vector.broadcast %203 : vector<1x1x128xf32> to vector<8x8x128xf32>
    %205 = arith.addf %188, %204 : vector<8x8x128xf32>
    %c0_18 = arith.constant 0 : index
    %c0_19 = arith.constant 0 : index
    %c0_20 = arith.constant 0 : index
    %c0_21 = arith.constant 0 : index
    %c0_22 = arith.constant 0 : index
    %206 = vector.load %arg6[%c0_18, %c0_19, %c0_20, %c0_21, %c0_22] : memref<3x1x8x8x128xf32, #tpu.memory_space<vmem>>, vector<1x1x8x8x128xf32>
    %207 = vector.shape_cast %206 : vector<1x1x8x8x128xf32> to vector<8x8x128xf32>
    %208 = vector.shape_cast %205 : vector<8x8x128xf32> to vector<1x1x8x8x128xf32>
    tpu.vector_store %arg6[%c0_18, %c0_19, %c0_20, %c0_21, %c0_22], %208 {strides = array<i32>} : memref<3x1x8x8x128xf32, #tpu.memory_space<vmem>>, vector<1x1x8x8x128xf32>,
    %209 = vector.extract_strided_slice %26 {offsets = [1, 0], sizes = [1, 128], strides = [1, 1]} : vector<3x128xf32> to vector<1x128xf32>
    %210 = vector.shape_cast %209 : vector<1x128xf32> to vector<128xf32>
    %211 = vector.shape_cast %210 : vector<128xf32> to vector<1x1x128xf32>
    %212 = vector.broadcast %211 : vector<1x1x128xf32> to vector<8x8x128xf32>
    %213 = arith.addf %194, %212 : vector<8x8x128xf32>
    %c1 = arith.constant 1 : index
    %c0_23 = arith.constant 0 : index
    %c0_24 = arith.constant 0 : index
    %c0_25 = arith.constant 0 : index
    %c0_26 = arith.constant 0 : index
    %214 = vector.load %arg6[%c1, %c0_23, %c0_24, %c0_25, %c0_26] : memref<3x1x8x8x128xf32, #tpu.memory_space<vmem>>, vector<1x1x8x8x128xf32>
    %215 = vector.shape_cast %214 : vector<1x1x8x8x128xf32> to vector<8x8x128xf32>
    %216 = vector.shape_cast %213 : vector<8x8x128xf32> to vector<1x1x8x8x128xf32>
    tpu.vector_store %arg6[%c1, %c0_23, %c0_24, %c0_25, %c0_26], %216 {strides = array<i32>} : memref<3x1x8x8x128xf32, #tpu.memory_space<vmem>>, vector<1x1x8x8x128xf32>,
    %217 = vector.extract_strided_slice %26 {offsets = [2, 0], sizes = [1, 128], strides = [1, 1]} : vector<3x128xf32> to vector<1x128xf32>
    %218 = vector.shape_cast %217 : vector<1x128xf32> to vector<128xf32>
    %219 = vector.shape_cast %218 : vector<128xf32> to vector<1x1x128xf32>
    %220 = vector.broadcast %219 : vector<1x1x128xf32> to vector<8x8x128xf32>
    %221 = arith.addf %200, %220 : vector<8x8x128xf32>
    %c2 = arith.constant 2 : index
    %c0_27 = arith.constant 0 : index
    %c0_28 = arith.constant 0 : index
    %c0_29 = arith.constant 0 : index
    %c0_30 = arith.constant 0 : index
    %222 = vector.load %arg6[%c2, %c0_27, %c0_28, %c0_29, %c0_30] : memref<3x1x8x8x128xf32, #tpu.memory_space<vmem>>, vector<1x1x8x8x128xf32>
    %223 = vector.shape_cast %222 : vector<1x1x8x8x128xf32> to vector<8x8x128xf32>
    %224 = vector.shape_cast %221 : vector<8x8x128xf32> to vector<1x1x8x8x128xf32>
    tpu.vector_store %arg6[%c2, %c0_27, %c0_28, %c0_29, %c0_30], %224 {strides = array<i32>} : memref<3x1x8x8x128xf32, #tpu.memory_space<vmem>>, vector<1x1x8x8x128xf32>,
    return
  }
  func.func @transform_0(%arg0: i32) -> (i32, i32, i32) {
    %c0_i32 = arith.constant 0 : i32
    %c0_i32_0 = arith.constant 0 : i32
    %c0_i32_1 = arith.constant 0 : i32
    return %arg0, %c0_i32, %c0_i32_0 : i32, i32, i32
  }
  func.func @transform_1(%arg0: i32) -> (i32, i32) {
    %c0_i32 = arith.constant 0 : i32
    %c0_i32_0 = arith.constant 0 : i32
    %c0_i32_1 = arith.constant 0 : i32
    return %c0_i32, %c0_i32_0 : i32, i32
  }
  func.func @transform_2(%arg0: i32) -> (i32, i32) {
    %c0_i32 = arith.constant 0 : i32
    %c0_i32_0 = arith.constant 0 : i32
    %c0_i32_1 = arith.constant 0 : i32
    return %c0_i32, %c0_i32_0 : i32, i32
  }
  func.func @transform_3(%arg0: i32) -> (i32, i32, i32) {
    %c0_i32 = arith.constant 0 : i32
    %c0_i32_0 = arith.constant 0 : i32
    %c0_i32_1 = arith.constant 0 : i32
    %c0_i32_2 = arith.constant 0 : i32
    return %c0_i32, %c0_i32_0, %c0_i32_1 : i32, i32, i32
  }
  func.func @transform_4(%arg0: i32) -> (i32, i32) {
    %c0_i32 = arith.constant 0 : i32
    %c0_i32_0 = arith.constant 0 : i32
    %c0_i32_1 = arith.constant 0 : i32
    return %c0_i32, %c0_i32_0 : i32, i32
  }
  func.func @transform_5(%arg0: i32) -> (i32, i32, i32, i32, i32) {
    %c0_i32 = arith.constant 0 : i32
    %c0_i32_0 = arith.constant 0 : i32
    %c0_i32_1 = arith.constant 0 : i32
    %c0_i32_2 = arith.constant 0 : i32
    %c0_i32_3 = arith.constant 0 : i32
    return %c0_i32, %arg0, %c0_i32_0, %c0_i32_1, %c0_i32_2 : i32, i32, i32, i32, i32
  }
}

</mosaic_0001>

<llo_original>
// kernel: tpu_custom_call.1
$region0: #{tpu_custom_call.1}
  #allocation0 [shape = 'u32[]', space=smem, size = 0x4, offset = 0x4, fixed_abs, tag = 'smem constant byte address 0x4 - core index']
  #allocation1 [shape = 'u32[72,128]{1,0:T(1,128)}', space=vmem, size = 0x9000, scoped, tag = 'internal scratch']
  #allocation4 [shape = 's32[]', space=sflag, size = 0x4, offset = 0, fixed_abs, tag = 'sflag constant byte address 0x0 - dummy sync flag']
  %s0 = inlined_call_operand.vmem [shape: bf16[2,64,32], index: 0, kind: input, shape index: {}]
  %s1 = inlined_call_operand.vmem [shape: bf16[32,128], index: 1, kind: input, shape index: {}]
  %s2 = inlined_call_operand.vmem [shape: f32[1,128], index: 2, kind: input, shape index: {}]
  %s3 = inlined_call_operand.vmem [shape: f32[3,9,128], index: 3, kind: input, shape index: {}]
  %s4 = inlined_call_operand.vmem [shape: f32[3,128], index: 4, kind: input, shape index: {}]
  %s5 = inlined_call_operand.hbm [shape: f32[3,2,8,8,128], index: 5, kind: output, shape index: {}]
  %s6 = sld [smem:[#allocation0]]
  $region53: #{tpu_custom_call.1} parent=0
    _
  %s8 = ssub.s32 1, %s6
  %s9 = scalar_select 0, %s8, %s6
  $region1: #{tpu_custom_call.1} parent=0
    #allocation2 [shape = 'u8[196608]{0}', space=vmem, size = 0x30000, scoped, tag = 'output window, operand 0']
    #allocation3 [shape = 's32[2]{0}', space=sflag, size = 0x8, scoped, tag = 'scoped memory for tpu_custom_call.1']
    %10 = vsyncpa [#allocation3], 0
    %s11 = scalar_lea.sflag [#allocation3], 1
    %12 = vsyncpa %s11, 0
    loop: start=0, step=1, limit=4
    $region2: #{tpu_custom_call.1} parent=1 // loop_pre_header
      _
    $region3: #{tpu_custom_call.1} parent=1 // loop_header
      %s14 = sphi 0, %s18
      %p15 = scmp.ge.s32.totalorder %s14, 4
      %s24 = sphi 0, %s26
      %s27 = sphi 0, %s24
      %s28 = sphi 0, %s27
      %s44 = sphi 0, %s28
      %s48 = sphi 0, %s48
      %s50 = sphi 0, %s48
      %s51 = sphi 0, %s50
      %s65 = sphi 0, %s51
      %s69 = sphi 0, %s69
      %s71 = sphi 0, %s69
      %s72 = sphi 0, %s71
      %s86 = sphi 0, %s72
      %s90 = sphi 0, %s90
      %s92 = sphi 0, %s90
      %s93 = sphi 0, %s92
      %s107 = sphi 0, %s93
      %s111 = sphi 0, %s111
      %s113 = sphi 0, %s111
      %s114 = sphi 0, %s113
      %s128 = sphi 0, %s114
      %s134 = sphi 0, %s136
      %s137 = sphi 0, %s134
      %s138 = sphi 0, %s137
      %s154 = sphi 0, %s138
    $region4: #{tpu_custom_call.1} parent=1 // loop_header_branch
      %17 = sbr.rel (%p15) target = $region8
    $region5: #{tpu_custom_call.1} parent=1 // loop_body
      %s19 = ssub.s32 %s14, 1
      %s20 = ssub.s32 %s14, 2
      %s21 = sadd.s32 %s14, 1
      %s22 = ssub.s32 %s14, %s21
      %p23 = scmp.eq.s32.totalorder %s22, 0
      %s25 = sadd.s32 %s24, 1
      %s26 = scalar_select %p23, %s24, %s25
      %p29 = pneg %p23
      %p30 = scmp.eq.s32.totalorder %s14, 1
      %p31 = por %p29, %p30
      %p32 = scmp.ne.s32.totalorder %s24, %s27
      %p33 = scmp.eq.s32.totalorder %s14, 0
      %p34 = por %p32, %p33
      %p35 = scmp.ne.s32.totalorder %s24, %s27
      %p36 = scmp.eq.s32.totalorder %s19, 1
      %p37 = por %p35, %p36
      %p38 = scmp.ne.s32.totalorder %s27, %s28
      %p39 = scmp.eq.s32.totalorder %s19, 0
      %p40 = por %p38, %p39
      %p41 = scmp.ne.s32.totalorder %s27, %s28
      %p42 = scmp.eq.s32.totalorder %s20, 1
      %p43 = por %p41, %p42
      %p45 = scmp.ne.s32.totalorder %s28, %s44
      %p46 = scmp.eq.s32.totalorder %s20, 0
      %p47 = por %p45, %p46
      %s49 = sadd.s32 %s48, 1
      %p52 = scmp.eq.s32.totalorder %s14, 1
      %p53 = scmp.ne.s32.totalorder %s48, %s50
      %p54 = scmp.eq.s32.totalorder %s14, 0
      %p55 = por %p53, %p54
      %p56 = scmp.ne.s32.totalorder %s48, %s50
      %p57 = scmp.eq.s32.totalorder %s19, 1
      %p58 = por %p56, %p57
      %p59 = scmp.ne.s32.totalorder %s50, %s51
      %p60 = scmp.eq.s32.totalorder %s19, 0
      %p61 = por %p59, %p60
      %p62 = scmp.ne.s32.totalorder %s50, %s51
      %p63 = scmp.eq.s32.totalorder %s20, 1
      %p64 = por %p62, %p63
      %p66 = scmp.ne.s32.totalorder %s51, %s65
      %p67 = scmp.eq.s32.totalorder %s20, 0
      %p68 = por %p66, %p67
      %s70 = sadd.s32 %s69, 1
      %p73 = scmp.eq.s32.totalorder %s14, 1
      %p74 = scmp.ne.s32.totalorder %s69, %s71
      %p75 = scmp.eq.s32.totalorder %s14, 0
      %p76 = por %p74, %p75
      %p77 = scmp.ne.s32.totalorder %s69, %s71
      %p78 = scmp.eq.s32.totalorder %s19, 1
      %p79 = por %p77, %p78
      %p80 = scmp.ne.s32.totalorder %s71, %s72
      %p81 = scmp.eq.s32.totalorder %s19, 0
      %p82 = por %p80, %p81
      %p83 = scmp.ne.s32.totalorder %s71, %s72
      %p84 = scmp.eq.s32.totalorder %s20, 1
      %p85 = por %p83, %p84
      %p87 = scmp.ne.s32.totalorder %s72, %s86
      %p88 = scmp.eq.s32.totalorder %s20, 0
      %p89 = por %p87, %p88
      %s91 = sadd.s32 %s90, 1
      %p94 = scmp.eq.s32.totalorder %s14, 1
      %p95 = scmp.ne.s32.totalorder %s90, %s92
      %p96 = scmp.eq.s32.totalorder %s14, 0
      %p97 = por %p95, %p96
      %p98 = scmp.ne.s32.totalorder %s90, %s92
      %p99 = scmp.eq.s32.totalorder %s19, 1
      %p100 = por %p98, %p99
      %p101 = scmp.ne.s32.totalorder %s92, %s93
      %p102 = scmp.eq.s32.totalorder %s19, 0
      %p103 = por %p101, %p102
      %p104 = scmp.ne.s32.totalorder %s92, %s93
      %p105 = scmp.eq.s32.totalorder %s20, 1
      %p106 = por %p104, %p105
      %p108 = scmp.ne.s32.totalorder %s93, %s107
      %p109 = scmp.eq.s32.totalorder %s20, 0
      %p110 = por %p108, %p109
      %s112 = sadd.s32 %s111, 1
      %p115 = scmp.eq.s32.totalorder %s14, 1
      %p116 = scmp.ne.s32.totalorder %s111, %s113
      %p117 = scmp.eq.s32.totalorder %s14, 0
      %p118 = por %p116, %p117
      %p119 = scmp.ne.s32.totalorder %s111, %s113
      %p120 = scmp.eq.s32.totalorder %s19, 1
      %p121 = por %p119, %p120
      %p122 = scmp.ne.s32.totalorder %s113, %s114
      %p123 = scmp.eq.s32.totalorder %s19, 0
      %p124 = por %p122, %p123
      %p125 = scmp.ne.s32.totalorder %s113, %s114
      %p126 = scmp.eq.s32.totalorder %s20, 1
      %p127 = por %p125, %p126
      %p129 = scmp.ne.s32.totalorder %s114, %s128
      %p130 = scmp.eq.s32.totalorder %s20, 0
      %p131 = por %p129, %p130
      %s132 = ssub.s32 %s14, %s21
      %p133 = scmp.eq.s32.totalorder %s132, 0
      %s135 = sadd.s32 %s134, 1
      %s136 = scalar_select %p133, %s134, %s135
      %p139 = pneg %p133
      %p140 = scmp.eq.s32.totalorder %s14, 1
      %p141 = por %p139, %p140
      %p142 = scmp.ne.s32.totalorder %s134, %s137
      %p143 = scmp.eq.s32.totalorder %s14, 0
      %p144 = por %p142, %p143
      %p145 = scmp.ne.s32.totalorder %s134, %s137
      %p146 = scmp.eq.s32.totalorder %s19, 1
      %p147 = por %p145, %p146
      %p148 = scmp.ne.s32.totalorder %s137, %s138
      %p149 = scmp.eq.s32.totalorder %s19, 0
      %p150 = por %p148, %p149
      %p151 = scmp.ne.s32.totalorder %s137, %s138
      %p152 = scmp.eq.s32.totalorder %s20, 1
      %p153 = por %p151, %p152
      %p155 = scmp.ne.s32.totalorder %s138, %s154
      %p156 = scmp.eq.s32.totalorder %s20, 0
      %p157 = por %p155, %p156
      %p158 = scmp.le.s32.totalorder 1, %s14
      %p159 = scmp.lt.s32.totalorder %s14, 3
      %p160 = pnand %p158, %p159
      %p161 = pneg %p160
      // Predicated region
      $region9: #{tpu_custom_call.1} parent=5 // pred_check
        _
      $region10: #{tpu_custom_call.1} parent=5 // pred_check_branch
        %163 = sbr.rel (%p160) target = $region12
      $region11: #{tpu_custom_call.1} parent=5 // pred_region
        %s164 = ssub.s32 %s14, 1
        // Predicated region
        $region13: #{tpu_custom_call.1} parent=11 // pred_check
          %p165 = pneg %p61
        $region14: #{tpu_custom_call.1} parent=11 // pred_check_branch
          %167 = sbr.rel (%p165) target = $region16
        $region15: #{tpu_custom_call.1} parent=11 // pred_region
          _
        $region16: #{tpu_custom_call.1} parent=11 // pred_fallthru
          _
        // Predicated region
        $region17: #{tpu_custom_call.1} parent=11 // pred_check
          %p168 = pneg %p82
        $region18: #{tpu_custom_call.1} parent=11 // pred_check_branch
          %170 = sbr.rel (%p168) target = $region20
        $region19: #{tpu_custom_call.1} parent=11 // pred_region
          _
        $region20: #{tpu_custom_call.1} parent=11 // pred_fallthru
          _
        // Predicated region
        $region21: #{tpu_custom_call.1} parent=11 // pred_check
          %p171 = pneg %p103
        $region22: #{tpu_custom_call.1} parent=11 // pred_check_branch
          %173 = sbr.rel (%p171) target = $region24
        $region23: #{tpu_custom_call.1} parent=11 // pred_region
          _
        $region24: #{tpu_custom_call.1} parent=11 // pred_fallthru
          _
        // Predicated region
        $region25: #{tpu_custom_call.1} parent=11 // pred_check
          %p174 = pneg %p124
        $region26: #{tpu_custom_call.1} parent=11 // pred_check_branch
          %176 = sbr.rel (%p174) target = $region28
        $region27: #{tpu_custom_call.1} parent=11 // pred_region
          _
        $region28: #{tpu_custom_call.1} parent=11 // pred_fallthru
          _
      $region12: #{tpu_custom_call.1} parent=5 // pred_fallthru
        _
      %p177 = scmp.lt.s32.totalorder %s14, 2
      // Predicated region
      $region29: #{tpu_custom_call.1} parent=5 // pred_check
        %p178 = pneg %p177
      $region30: #{tpu_custom_call.1} parent=5 // pred_check_branch
        %180 = sbr.rel (%p178) target = $region32
      $region31: #{tpu_custom_call.1} parent=5 // pred_region
        // Predicated region
        $region33: #{tpu_custom_call.1} parent=31 // pred_check
          %p181 = pneg %p34
        $region34: #{tpu_custom_call.1} parent=31 // pred_check_branch
          %183 = sbr.rel (%p181) target = $region36
        $region35: #{tpu_custom_call.1} parent=31 // pred_region
          %p184 = scmp.lt.s32.totalorder %s14, 1
          %s185 = scalar_select %p184, %s14, 1
          %s186 = smul.addr %s185, 8
          %s187 = smul.addr %s186, 4
          %s188 = scalar_lea.vmem %s0, %s187
        $region36: #{tpu_custom_call.1} parent=31 // pred_fallthru
          _
      $region32: #{tpu_custom_call.1} parent=5 // pred_fallthru
        _
      %p189 = scmp.le.s32.totalorder 1, %s14
      %p190 = scmp.lt.s32.totalorder %s14, 3
      %p191 = pnand %p189, %p190
      %p192 = pneg %p191
      // Predicated region
      $region37: #{tpu_custom_call.1} parent=5 // pred_check
        _
      $region38: #{tpu_custom_call.1} parent=5 // pred_check_branch
        %194 = sbr.rel (%p191) target = $region40
      $region39: #{tpu_custom_call.1} parent=5 // pred_region
        %s195 = ssub.s32 %s14, 1
        %p196 = scmp.lt.s32.totalorder %s19, 1
        %s197 = scalar_select %p196, %s19, 1
        %s198 = smul.addr %s197, 8
        %s199 = smul.addr %s198, 4
        %s200 = scalar_lea.vmem %s0, %s199
        %p201 = pneg %p40
        %p202 = pneg %p37
        %p203 = pneg %p61
        %p204 = pneg %p58
        %p205 = pneg %p82
        %p206 = pneg %p79
        %p207 = pneg %p103
        %p208 = pneg %p100
        %p209 = pneg %p124
        %p210 = pneg %p121
        %p211 = pneg %p150
        %p212 = pneg %p147
        %s213 = sand.u32 %s137, 1
        %s214 = scalar_lea.sflag [#allocation3], %s213
        %s215 = sand.u32 %s137, 1
        %s216 = smul.addr %s215, 192
        %s217 = scalar_lea.vmem [#allocation2], %s216
        %p218 = scmp.lt.s32.totalorder %s19, 1
        %s219 = scalar_select %p218, %s19, 1
        %s220 = smul.addr %s219, 8
        %s221 = smul.addr %s220, 4
        %s222 = scalar_lea.vmem %s0, %s221
        %v224 = vld [vmem:[%s222] sm:$0xf]
        %v225 = vld [vmem:[%s222 + $0x4] sm:$0xf]
        %v226 = vld [vmem:[%s222 + $0x8] sm:$0xf]
        %v227 = vld [vmem:[%s222 + $0xc] sm:$0xf]
        %v228 = vld [vmem:[%s222 + $0x10] sm:$0xf]
        %v229 = vld [vmem:[%s222 + $0x14] sm:$0xf]
        %v230 = vld [vmem:[%s222 + $0x18] sm:$0xf]
        %v231 = vld [vmem:[%s222 + $0x1c] sm:$0xf]
        %v232 = vld [vmem:[%s1] sm:$0xf]
        %v233 = vld [vmem:[%s1 + $0x4] sm:$0xf]
        %v234 = vld [vmem:[%s1 + $0x8] sm:$0xf]
        %v235 = vld [vmem:[%s1 + $0xc] sm:$0xf]
        %v236 = vld [vmem:[%s2] sm:$0x1]
        %v238 = vperm.slane %v236, 0
        %v248 = vunpack.c.l.b16 %v224
        %v249 = vunpack.c.l.b16 %v225
        %v250 = vunpack.c.l.b16 %v226
        %v251 = vunpack.c.l.b16 %v227
        %v252 = vunpack.c.l.b16 %v228
        %v253 = vunpack.c.l.b16 %v229
        %v254 = vunpack.c.l.b16 %v230
        %v255 = vunpack.c.l.b16 %v231
        %v256 = vpack.c.b16 %v249, %v248
        %v257 = vpack.c.b16 %v251, %v250
        %v258 = vpack.c.b16 %v253, %v252
        %v259 = vpack.c.b16 %v255, %v254
        %v264 = vunpack.c.l.b16 %v232
        %v265 = vunpack.c.l.b16 %v233
        %v266 = vunpack.c.l.b16 %v234
        %v267 = vunpack.c.l.b16 %v235
        %v268 = vpack.c.b16 %v265, %v264
        %v269 = vpack.c.b16 %v267, %v266
        %vm272 = vcmask 261120
        %v274 = vsel %vm272, %v256, 0
        %v277 = vsel %vm272, %v257, 0
        %v280 = vsel %vm272, %v258, 0
        %v283 = vsel %vm272, %v259, 0
        %285 = vmatpush.bf16.msra.mxu0 0
        %286 = vmatpush.bf16.msra.mxu0 0
        %287 = vmatpush.bf16.msra.mxu0 0
        %288 = vmatpush.bf16.msra.mxu0 0
        %289 = vmatpush.bf16.msra.mxu0 0
        %290 = vmatpush.bf16.msra.mxu0 0
        %291 = vmatpush.bf16.msra.mxu0 %v269
        %292 = vmatpush.bf16.msra.mxu0 %v268
        %293 = vmatmul.bf16.gmra.mxu0 %v274
        %v294 = vpop.f32.mrf.mxu0
        %v295 = vadd.f32 %v238, %v294
        %v296 = vpop.f32.mrf.mxu0
        %v297 = vadd.f32 %v238, %v296
        %298 = vmatmul.bf16.gmra.mxu0 %v277
        %v299 = vpop.f32.mrf.mxu0
        %v300 = vadd.f32 %v238, %v299
        %v301 = vpop.f32.mrf.mxu0
        %v302 = vadd.f32 %v238, %v301
        %303 = vmatmul.bf16.gmra.mxu0 %v280
        %v304 = vpop.f32.mrf.mxu0
        %v305 = vadd.f32 %v238, %v304
        %v306 = vpop.f32.mrf.mxu0
        %v307 = vadd.f32 %v238, %v306
        %308 = vmatmul.bf16.gmra.mxu0 %v283
        %v309 = vpop.f32.mrf.mxu0
        %v310 = vadd.f32 %v238, %v309
        %v311 = vpop.f32.mrf.mxu0
        %v312 = vadd.f32 %v238, %v311
        %313 = vdwg.mxu0
        %v314 = vlaneseq
        %v315 = vshrl.u32 %v314, 7
        %vm316 = vcmp.ge.s32.totalorder %v315, 1
        %v317 = vrot.slane %v295, 7
        %v318 = vrot.slane %v297, 7
        %v319 = vrot.slane %v300, 7
        %v320 = vrot.slane %v302, 7
        %v321 = vrot.slane %v305, 7
        %v322 = vrot.slane %v307, 7
        %v323 = vrot.slane %v310, 7
        %v324 = vrot.slane %v312, 7
        %v325 = vsel %vm316, 1, 0
        %vm326 = vcmp.eq.s32.totalorder %v325, 1
        %v327 = vsel %vm326, 0.0, 0.0
        %v328 = vsel %vm326, %v317, 0.0
        %v329 = vsel %vm326, %v318, 0.0
        %v330 = vsel %vm326, %v319, 0.0
        %v331 = vsel %vm326, %v320, 0.0
        %v332 = vsel %vm326, %v321, 0.0
        %v333 = vsel %vm326, %v322, 0.0
        %v334 = vsel %vm326, %v323, 0.0
        %v335 = vsel %vm326, %v324, 0.0
        %vm336 = vcmp.le.s32.totalorder %v315, 6
        %v337 = vrot.slane %v295, 1
        %v338 = vrot.slane %v297, 1
        %v339 = vrot.slane %v300, 1
        %v340 = vrot.slane %v302, 1
        %v341 = vrot.slane %v305, 1
        %v342 = vrot.slane %v307, 1
        %v343 = vrot.slane %v310, 1
        %v344 = vrot.slane %v312, 1
        %v345 = vsel %vm336, 1, 0
        %vm346 = vcmp.eq.s32.totalorder %v345, 1
        %v347 = vsel %vm346, 0.0, 0.0
        %v348 = vsel %vm346, %v337, 0.0
        %v349 = vsel %vm346, %v338, 0.0
        %v350 = vsel %vm346, %v339, 0.0
        %v351 = vsel %vm346, %v340, 0.0
        %v352 = vsel %vm346, %v341, 0.0
        %v353 = vsel %vm346, %v342, 0.0
        %v354 = vsel %vm346, %v343, 0.0
        %v355 = vsel %vm346, %v344, 0.0
        %v356 = vld [vmem:[%s3] sm:$0xff]
        %v357 = vld [vmem:[%s3 + $0x8] sm:$0x1]
        %v358 = vld [vmem:[%s3 + $0x10] sm:$0xff]
        %v359 = vld [vmem:[%s3 + $0x18] sm:$0x1]
        %v360 = vld [vmem:[%s3 + $0x20] sm:$0xff]
        %v361 = vld [vmem:[%s3 + $0x28] sm:$0x1]
        %v362 = vld [vmem:[%s4] sm:$0x7]
        %v363 = vperm.slane %v356, 0
        %v364 = vmul.f32 %v327, %v363
        %v365 = vmul.f32 %v328, %v363
        %v366 = vmul.f32 %v329, %v363
        %v367 = vmul.f32 %v330, %v363
        %v368 = vmul.f32 %v331, %v363
        %v369 = vmul.f32 %v332, %v363
        %v370 = vmul.f32 %v333, %v363
        %v371 = vmul.f32 %v334, %v363
        %v372 = vadd.f32 %v364, 0.0
        %v373 = vadd.f32 %v365, 0.0
        %v374 = vadd.f32 %v366, 0.0
        %v375 = vadd.f32 %v367, 0.0
        %v376 = vadd.f32 %v368, 0.0
        %v377 = vadd.f32 %v369, 0.0
        %v378 = vadd.f32 %v370, 0.0
        %v379 = vadd.f32 %v371, 0.0
        %v380 = vperm.slane %v358, 0
        %v381 = vmul.f32 %v327, %v380
        %v382 = vmul.f32 %v328, %v380
        %v383 = vmul.f32 %v329, %v380
        %v384 = vmul.f32 %v330, %v380
        %v385 = vmul.f32 %v331, %v380
        %v386 = vmul.f32 %v332, %v380
        %v387 = vmul.f32 %v333, %v380
        %v388 = vmul.f32 %v334, %v380
        %v389 = vadd.f32 %v381, 0.0
        %v390 = vadd.f32 %v382, 0.0
        %v391 = vadd.f32 %v383, 0.0
        %v392 = vadd.f32 %v384, 0.0
        %v393 = vadd.f32 %v385, 0.0
        %v394 = vadd.f32 %v386, 0.0
        %v395 = vadd.f32 %v387, 0.0
        %v396 = vadd.f32 %v388, 0.0
        %v397 = vperm.slane %v360, 0
        %v398 = vmul.f32 %v327, %v397
        %v399 = vmul.f32 %v328, %v397
        %v400 = vmul.f32 %v329, %v397
        %v401 = vmul.f32 %v330, %v397
        %v402 = vmul.f32 %v331, %v397
        %v403 = vmul.f32 %v332, %v397
        %v404 = vmul.f32 %v333, %v397
        %v405 = vmul.f32 %v334, %v397
        %v406 = vadd.f32 %v398, 0.0
        %v407 = vadd.f32 %v399, 0.0
        %v408 = vadd.f32 %v400, 0.0
        %v409 = vadd.f32 %v401, 0.0
        %v410 = vadd.f32 %v402, 0.0
        %v411 = vadd.f32 %v403, 0.0
        %v412 = vadd.f32 %v404, 0.0
        %v413 = vadd.f32 %v405, 0.0
        %v414 = vperm.slane %v356, 3
        %v415 = vmul.f32 %v328, %v414
        %v416 = vmul.f32 %v329, %v414
        %v417 = vmul.f32 %v330, %v414
        %v418 = vmul.f32 %v331, %v414
        %v419 = vmul.f32 %v332, %v414
        %v420 = vmul.f32 %v333, %v414
        %v421 = vmul.f32 %v334, %v414
        %v422 = vmul.f32 %v335, %v414
        %v423 = vadd.f32 %v372, %v415
        %v424 = vadd.f32 %v373, %v416
        %v425 = vadd.f32 %v374, %v417
        %v426 = vadd.f32 %v375, %v418
        %v427 = vadd.f32 %v376, %v419
        %v428 = vadd.f32 %v377, %v420
        %v429 = vadd.f32 %v378, %v421
        %v430 = vadd.f32 %v379, %v422
        %v431 = vperm.slane %v358, 3
        %v432 = vmul.f32 %v328, %v431
        %v433 = vmul.f32 %v329, %v431
        %v434 = vmul.f32 %v330, %v431
        %v435 = vmul.f32 %v331, %v431
        %v436 = vmul.f32 %v332, %v431
        %v437 = vmul.f32 %v333, %v431
        %v438 = vmul.f32 %v334, %v431
        %v439 = vmul.f32 %v335, %v431
        %v440 = vadd.f32 %v389, %v432
        %v441 = vadd.f32 %v390, %v433
        %v442 = vadd.f32 %v391, %v434
        %v443 = vadd.f32 %v392, %v435
        %v444 = vadd.f32 %v393, %v436
        %v445 = vadd.f32 %v394, %v437
        %v446 = vadd.f32 %v395, %v438
        %v447 = vadd.f32 %v396, %v439
        %v448 = vperm.slane %v360, 3
        %v449 = vmul.f32 %v328, %v448
        %v450 = vmul.f32 %v329, %v448
        %v451 = vmul.f32 %v330, %v448
        %v452 = vmul.f32 %v331, %v448
        %v453 = vmul.f32 %v332, %v448
        %v454 = vmul.f32 %v333, %v448
        %v455 = vmul.f32 %v334, %v448
        %v456 = vmul.f32 %v335, %v448
        %v457 = vadd.f32 %v406, %v449
        %v458 = vadd.f32 %v407, %v450
        %v459 = vadd.f32 %v408, %v451
        %v460 = vadd.f32 %v409, %v452
        %v461 = vadd.f32 %v410, %v453
        %v462 = vadd.f32 %v411, %v454
        %v463 = vadd.f32 %v412, %v455
        %v464 = vadd.f32 %v413, %v456
        %v465 = vperm.slane %v356, 6
        %v466 = vmul.f32 %v329, %v465
        %v467 = vmul.f32 %v330, %v465
        %v468 = vmul.f32 %v331, %v465
        %v469 = vmul.f32 %v332, %v465
        %v470 = vmul.f32 %v333, %v465
        %v471 = vmul.f32 %v334, %v465
        %v472 = vmul.f32 %v335, %v465
        %v473 = vmul.f32 %v327, %v465
        %v474 = vadd.f32 %v423, %v466
        %v475 = vadd.f32 %v424, %v467
        %v476 = vadd.f32 %v425, %v468
        %v477 = vadd.f32 %v426, %v469
        %v478 = vadd.f32 %v427, %v470
        %v479 = vadd.f32 %v428, %v471
        %v480 = vadd.f32 %v429, %v472
        %v481 = vadd.f32 %v430, %v473
        %v482 = vperm.slane %v358, 6
        %v483 = vmul.f32 %v329, %v482
        %v484 = vmul.f32 %v330, %v482
        %v485 = vmul.f32 %v331, %v482
        %v486 = vmul.f32 %v332, %v482
        %v487 = vmul.f32 %v333, %v482
        %v488 = vmul.f32 %v334, %v482
        %v489 = vmul.f32 %v335, %v482
        %v490 = vmul.f32 %v327, %v482
        %v491 = vadd.f32 %v440, %v483
        %v492 = vadd.f32 %v441, %v484
        %v493 = vadd.f32 %v442, %v485
        %v494 = vadd.f32 %v443, %v486
        %v495 = vadd.f32 %v444, %v487
        %v496 = vadd.f32 %v445, %v488
        %v497 = vadd.f32 %v446, %v489
        %v498 = vadd.f32 %v447, %v490
        %v499 = vperm.slane %v360, 6
        %v500 = vmul.f32 %v329, %v499
        %v501 = vmul.f32 %v330, %v499
        %v502 = vmul.f32 %v331, %v499
        %v503 = vmul.f32 %v332, %v499
        %v504 = vmul.f32 %v333, %v499
        %v505 = vmul.f32 %v334, %v499
        %v506 = vmul.f32 %v335, %v499
        %v507 = vmul.f32 %v327, %v499
        %v508 = vadd.f32 %v457, %v500
        %v509 = vadd.f32 %v458, %v501
        %v510 = vadd.f32 %v459, %v502
        %v511 = vadd.f32 %v460, %v503
        %v512 = vadd.f32 %v461, %v504
        %v513 = vadd.f32 %v462, %v505
        %v514 = vadd.f32 %v463, %v506
        %v515 = vadd.f32 %v464, %v507
        %v516 = vperm.slane %v356, 1
        %v517 = vmul.f32 %v516, 0.0
        %v518 = vmul.f32 %v295, %v516
        %v519 = vmul.f32 %v297, %v516
        %v520 = vmul.f32 %v300, %v516
        %v521 = vmul.f32 %v302, %v516
        %v522 = vmul.f32 %v305, %v516
        %v523 = vmul.f32 %v307, %v516
        %v524 = vmul.f32 %v310, %v516
        %v525 = vadd.f32 %v474, %v517
        %v526 = vadd.f32 %v475, %v518
        %v527 = vadd.f32 %v476, %v519
        %v528 = vadd.f32 %v477, %v520
        %v529 = vadd.f32 %v478, %v521
        %v530 = vadd.f32 %v479, %v522
        %v531 = vadd.f32 %v480, %v523
        %v532 = vadd.f32 %v481, %v524
        %v533 = vperm.slane %v358, 1
        %v534 = vmul.f32 %v533, 0.0
        %v535 = vmul.f32 %v295, %v533
        %v536 = vmul.f32 %v297, %v533
        %v537 = vmul.f32 %v300, %v533
        %v538 = vmul.f32 %v302, %v533
        %v539 = vmul.f32 %v305, %v533
        %v540 = vmul.f32 %v307, %v533
        %v541 = vmul.f32 %v310, %v533
        %v542 = vadd.f32 %v491, %v534
        %v543 = vadd.f32 %v492, %v535
        %v544 = vadd.f32 %v493, %v536
        %v545 = vadd.f32 %v494, %v537
        %v546 = vadd.f32 %v495, %v538
        %v547 = vadd.f32 %v496, %v539
        %v548 = vadd.f32 %v497, %v540
        %v549 = vadd.f32 %v498, %v541
        %v550 = vperm.slane %v360, 1
        %v551 = vmul.f32 %v550, 0.0
        %v552 = vmul.f32 %v295, %v550
        %v553 = vmul.f32 %v297, %v550
        %v554 = vmul.f32 %v300, %v550
        %v555 = vmul.f32 %v302, %v550
        %v556 = vmul.f32 %v305, %v550
        %v557 = vmul.f32 %v307, %v550
        %v558 = vmul.f32 %v310, %v550
        %v559 = vadd.f32 %v508, %v551
        %v560 = vadd.f32 %v509, %v552
        %v561 = vadd.f32 %v510, %v553
        %v562 = vadd.f32 %v511, %v554
        %v563 = vadd.f32 %v512, %v555
        %v564 = vadd.f32 %v513, %v556
        %v565 = vadd.f32 %v514, %v557
        %v566 = vadd.f32 %v515, %v558
        %v567 = vperm.slane %v356, 4
        %v568 = vmul.f32 %v295, %v567
        %v569 = vmul.f32 %v297, %v567
        %v570 = vmul.f32 %v300, %v567
        %v571 = vmul.f32 %v302, %v567
        %v572 = vmul.f32 %v305, %v567
        %v573 = vmul.f32 %v307, %v567
        %v574 = vmul.f32 %v310, %v567
        %v575 = vmul.f32 %v312, %v567
        %v576 = vadd.f32 %v525, %v568
        %v577 = vadd.f32 %v526, %v569
        %v578 = vadd.f32 %v527, %v570
        %v579 = vadd.f32 %v528, %v571
        %v580 = vadd.f32 %v529, %v572
        %v581 = vadd.f32 %v530, %v573
        %v582 = vadd.f32 %v531, %v574
        %v583 = vadd.f32 %v532, %v575
        %v584 = vperm.slane %v358, 4
        %v585 = vmul.f32 %v295, %v584
        %v586 = vmul.f32 %v297, %v584
        %v587 = vmul.f32 %v300, %v584
        %v588 = vmul.f32 %v302, %v584
        %v589 = vmul.f32 %v305, %v584
        %v590 = vmul.f32 %v307, %v584
        %v591 = vmul.f32 %v310, %v584
        %v592 = vmul.f32 %v312, %v584
        %v593 = vadd.f32 %v542, %v585
        %v594 = vadd.f32 %v543, %v586
        %v595 = vadd.f32 %v544, %v587
        %v596 = vadd.f32 %v545, %v588
        %v597 = vadd.f32 %v546, %v589
        %v598 = vadd.f32 %v547, %v590
        %v599 = vadd.f32 %v548, %v591
        %v600 = vadd.f32 %v549, %v592
        %v601 = vperm.slane %v360, 4
        %v602 = vmul.f32 %v295, %v601
        %v603 = vmul.f32 %v297, %v601
        %v604 = vmul.f32 %v300, %v601
        %v605 = vmul.f32 %v302, %v601
        %v606 = vmul.f32 %v305, %v601
        %v607 = vmul.f32 %v307, %v601
        %v608 = vmul.f32 %v310, %v601
        %v609 = vmul.f32 %v312, %v601
        %v610 = vadd.f32 %v559, %v602
        %v611 = vadd.f32 %v560, %v603
        %v612 = vadd.f32 %v561, %v604
        %v613 = vadd.f32 %v562, %v605
        %v614 = vadd.f32 %v563, %v606
        %v615 = vadd.f32 %v564, %v607
        %v616 = vadd.f32 %v565, %v608
        %v617 = vadd.f32 %v566, %v609
        %v618 = vperm.slane %v356, 7
        %v619 = vmul.f32 %v297, %v618
        %v620 = vmul.f32 %v300, %v618
        %v621 = vmul.f32 %v302, %v618
        %v622 = vmul.f32 %v305, %v618
        %v623 = vmul.f32 %v307, %v618
        %v624 = vmul.f32 %v310, %v618
        %v625 = vmul.f32 %v312, %v618
        %v626 = vmul.f32 %v618, 0.0
        %v627 = vadd.f32 %v576, %v619
        %v628 = vadd.f32 %v577, %v620
        %v629 = vadd.f32 %v578, %v621
        %v630 = vadd.f32 %v579, %v622
        %v631 = vadd.f32 %v580, %v623
        %v632 = vadd.f32 %v581, %v624
        %v633 = vadd.f32 %v582, %v625
        %v634 = vadd.f32 %v583, %v626
        %v635 = vperm.slane %v358, 7
        %v636 = vmul.f32 %v297, %v635
        %v637 = vmul.f32 %v300, %v635
        %v638 = vmul.f32 %v302, %v635
        %v639 = vmul.f32 %v305, %v635
        %v640 = vmul.f32 %v307, %v635
        %v641 = vmul.f32 %v310, %v635
        %v642 = vmul.f32 %v312, %v635
        %v643 = vmul.f32 %v635, 0.0
        %v644 = vadd.f32 %v593, %v636
        %v645 = vadd.f32 %v594, %v637
        %v646 = vadd.f32 %v595, %v638
        %v647 = vadd.f32 %v596, %v639
        %v648 = vadd.f32 %v597, %v640
        %v649 = vadd.f32 %v598, %v641
        %v650 = vadd.f32 %v599, %v642
        %v651 = vadd.f32 %v600, %v643
        %v652 = vperm.slane %v360, 7
        %v653 = vmul.f32 %v297, %v652
        %v654 = vmul.f32 %v300, %v652
        %v655 = vmul.f32 %v302, %v652
        %v656 = vmul.f32 %v305, %v652
        %v657 = vmul.f32 %v307, %v652
        %v658 = vmul.f32 %v310, %v652
        %v659 = vmul.f32 %v312, %v652
        %v660 = vmul.f32 %v652, 0.0
        %v661 = vadd.f32 %v610, %v653
        %v662 = vadd.f32 %v611, %v654
        %v663 = vadd.f32 %v612, %v655
        %v664 = vadd.f32 %v613, %v656
        %v665 = vadd.f32 %v614, %v657
        %v666 = vadd.f32 %v615, %v658
        %v667 = vadd.f32 %v616, %v659
        %v668 = vadd.f32 %v617, %v660
        %v669 = vperm.slane %v356, 2
        %v670 = vmul.f32 %v347, %v669
        %v671 = vmul.f32 %v348, %v669
        %v672 = vmul.f32 %v349, %v669
        %v673 = vmul.f32 %v350, %v669
        %v674 = vmul.f32 %v351, %v669
        %v675 = vmul.f32 %v352, %v669
        %v676 = vmul.f32 %v353, %v669
        %v677 = vmul.f32 %v354, %v669
        %v678 = vadd.f32 %v627, %v670
        %v679 = vadd.f32 %v628, %v671
        %v680 = vadd.f32 %v629, %v672
        %v681 = vadd.f32 %v630, %v673
        %v682 = vadd.f32 %v631, %v674
        %v683 = vadd.f32 %v632, %v675
        %v684 = vadd.f32 %v633, %v676
        %v685 = vadd.f32 %v634, %v677
        %v686 = vperm.slane %v358, 2
        %v687 = vmul.f32 %v347, %v686
        %v688 = vmul.f32 %v348, %v686
        %v689 = vmul.f32 %v349, %v686
        %v690 = vmul.f32 %v350, %v686
        %v691 = vmul.f32 %v351, %v686
        %v692 = vmul.f32 %v352, %v686
        %v693 = vmul.f32 %v353, %v686
        %v694 = vmul.f32 %v354, %v686
        %v695 = vadd.f32 %v644, %v687
        %v696 = vadd.f32 %v645, %v688
        %v697 = vadd.f32 %v646, %v689
        %v698 = vadd.f32 %v647, %v690
        %v699 = vadd.f32 %v648, %v691
        %v700 = vadd.f32 %v649, %v692
        %v701 = vadd.f32 %v650, %v693
        %v702 = vadd.f32 %v651, %v694
        %v703 = vperm.slane %v360, 2
        %v704 = vmul.f32 %v347, %v703
        %v705 = vmul.f32 %v348, %v703
        %v706 = vmul.f32 %v349, %v703
        %v707 = vmul.f32 %v350, %v703
        %v708 = vmul.f32 %v351, %v703
        %v709 = vmul.f32 %v352, %v703
        %v710 = vmul.f32 %v353, %v703
        %v711 = vmul.f32 %v354, %v703
        %v712 = vadd.f32 %v661, %v704
        %v713 = vadd.f32 %v662, %v705
        %v714 = vadd.f32 %v663, %v706
        %v715 = vadd.f32 %v664, %v707
        %v716 = vadd.f32 %v665, %v708
        %v717 = vadd.f32 %v666, %v709
        %v718 = vadd.f32 %v667, %v710
        %v719 = vadd.f32 %v668, %v711
        %v720 = vperm.slane %v356, 5
        %v721 = vmul.f32 %v348, %v720
        %v722 = vmul.f32 %v349, %v720
        %v723 = vmul.f32 %v350, %v720
        %v724 = vmul.f32 %v351, %v720
        %v725 = vmul.f32 %v352, %v720
        %v726 = vmul.f32 %v353, %v720
        %v727 = vmul.f32 %v354, %v720
        %v728 = vmul.f32 %v355, %v720
        %v729 = vadd.f32 %v678, %v721
        %v730 = vadd.f32 %v679, %v722
        %v731 = vadd.f32 %v680, %v723
        %v732 = vadd.f32 %v681, %v724
        %v733 = vadd.f32 %v682, %v725
        %v734 = vadd.f32 %v683, %v726
        %v735 = vadd.f32 %v684, %v727
        %v736 = vadd.f32 %v685, %v728
        %v737 = vperm.slane %v358, 5
        %v738 = vmul.f32 %v348, %v737
        %v739 = vmul.f32 %v349, %v737
        %v740 = vmul.f32 %v350, %v737
        %v741 = vmul.f32 %v351, %v737
        %v742 = vmul.f32 %v352, %v737
        %v743 = vmul.f32 %v353, %v737
        %v744 = vmul.f32 %v354, %v737
        %v745 = vmul.f32 %v355, %v737
        %v746 = vadd.f32 %v695, %v738
        %v747 = vadd.f32 %v696, %v739
        %v748 = vadd.f32 %v697, %v740
        %v749 = vadd.f32 %v698, %v741
        %v750 = vadd.f32 %v699, %v742
        %v751 = vadd.f32 %v700, %v743
        %v752 = vadd.f32 %v701, %v744
        %v753 = vadd.f32 %v702, %v745
        %v754 = vperm.slane %v360, 5
        %v755 = vmul.f32 %v348, %v754
        %v756 = vmul.f32 %v349, %v754
        %v757 = vmul.f32 %v350, %v754
        %v758 = vmul.f32 %v351, %v754
        %v759 = vmul.f32 %v352, %v754
        %v760 = vmul.f32 %v353, %v754
        %v761 = vmul.f32 %v354, %v754
        %v762 = vmul.f32 %v355, %v754
        %v763 = vadd.f32 %v712, %v755
        %v764 = vadd.f32 %v713, %v756
        %v765 = vadd.f32 %v714, %v757
        %v766 = vadd.f32 %v715, %v758
        %v767 = vadd.f32 %v716, %v759
        %v768 = vadd.f32 %v717, %v760
        %v769 = vadd.f32 %v718, %v761
        %v770 = vadd.f32 %v719, %v762
        %v771 = vperm.slane %v357, 0
        %v772 = vmul.f32 %v349, %v771
        %v773 = vmul.f32 %v350, %v771
        %v774 = vmul.f32 %v351, %v771
        %v775 = vmul.f32 %v352, %v771
        %v776 = vmul.f32 %v353, %v771
        %v777 = vmul.f32 %v354, %v771
        %v778 = vmul.f32 %v355, %v771
        %v779 = vmul.f32 %v347, %v771
        %v780 = vadd.f32 %v729, %v772
        %v781 = vadd.f32 %v730, %v773
        %v782 = vadd.f32 %v731, %v774
        %v783 = vadd.f32 %v732, %v775
        %v784 = vadd.f32 %v733, %v776
        %v785 = vadd.f32 %v734, %v777
        %v786 = vadd.f32 %v735, %v778
        %v787 = vadd.f32 %v736, %v779
        %v788 = vperm.slane %v359, 0
        %v789 = vmul.f32 %v349, %v788
        %v790 = vmul.f32 %v350, %v788
        %v791 = vmul.f32 %v351, %v788
        %v792 = vmul.f32 %v352, %v788
        %v793 = vmul.f32 %v353, %v788
        %v794 = vmul.f32 %v354, %v788
        %v795 = vmul.f32 %v355, %v788
        %v796 = vmul.f32 %v347, %v788
        %v797 = vadd.f32 %v746, %v789
        %v798 = vadd.f32 %v747, %v790
        %v799 = vadd.f32 %v748, %v791
        %v800 = vadd.f32 %v749, %v792
        %v801 = vadd.f32 %v750, %v793
        %v802 = vadd.f32 %v751, %v794
        %v803 = vadd.f32 %v752, %v795
        %v804 = vadd.f32 %v753, %v796
        %v805 = vperm.slane %v361, 0
        %v806 = vmul.f32 %v349, %v805
        %v807 = vmul.f32 %v350, %v805
        %v808 = vmul.f32 %v351, %v805
        %v809 = vmul.f32 %v352, %v805
        %v810 = vmul.f32 %v353, %v805
        %v811 = vmul.f32 %v354, %v805
        %v812 = vmul.f32 %v355, %v805
        %v813 = vmul.f32 %v347, %v805
        %v814 = vadd.f32 %v763, %v806
        %v815 = vadd.f32 %v764, %v807
        %v816 = vadd.f32 %v765, %v808
        %v817 = vadd.f32 %v766, %v809
        %v818 = vadd.f32 %v767, %v810
        %v819 = vadd.f32 %v768, %v811
        %v820 = vadd.f32 %v769, %v812
        %v821 = vadd.f32 %v770, %v813
        %v822 = vperm.slane %v362, 0
        %v823 = vadd.f32 %v780, %v822
        %v824 = vadd.f32 %v781, %v822
        %v825 = vadd.f32 %v782, %v822
        %v826 = vadd.f32 %v783, %v822
        %v827 = vadd.f32 %v784, %v822
        %v828 = vadd.f32 %v785, %v822
        %v829 = vadd.f32 %v786, %v822
        %v830 = vadd.f32 %v787, %v822
        %831 = vst [vmem:[%s217] sm:$0xff] %v823
        %832 = vst [vmem:[%s217 + $0x8] sm:$0xff] %v824
        %833 = vst [vmem:[%s217 + $0x10] sm:$0xff] %v825
        %834 = vst [vmem:[%s217 + $0x18] sm:$0xff] %v826
        %835 = vst [vmem:[%s217 + $0x20] sm:$0xff] %v827
        %836 = vst [vmem:[%s217 + $0x28] sm:$0xff] %v828
        %837 = vst [vmem:[%s217 + $0x30] sm:$0xff] %v829
        %838 = vst [vmem:[%s217 + $0x38] sm:$0xff] %v830
        %v839 = vperm.slane %v362, 1
        %v840 = vadd.f32 %v797, %v839
        %v841 = vadd.f32 %v798, %v839
        %v842 = vadd.f32 %v799, %v839
        %v843 = vadd.f32 %v800, %v839
        %v844 = vadd.f32 %v801, %v839
        %v845 = vadd.f32 %v802, %v839
        %v846 = vadd.f32 %v803, %v839
        %v847 = vadd.f32 %v804, %v839
        %s848 = scalar_lea.vmem %s217, 64 [#allocation2]
        %849 = vst [vmem:[%s848] sm:$0xff] %v840
        %850 = vst [vmem:[%s848 + $0x8] sm:$0xff] %v841
        %851 = vst [vmem:[%s848 + $0x10] sm:$0xff] %v842
        %852 = vst [vmem:[%s848 + $0x18] sm:$0xff] %v843
        %853 = vst [vmem:[%s848 + $0x20] sm:$0xff] %v844
        %854 = vst [vmem:[%s848 + $0x28] sm:$0xff] %v845
        %855 = vst [vmem:[%s848 + $0x30] sm:$0xff] %v846
        %856 = vst [vmem:[%s848 + $0x38] sm:$0xff] %v847
        %v857 = vperm.slane %v362, 2
        %v858 = vadd.f32 %v814, %v857
        %v859 = vadd.f32 %v815, %v857
        %v860 = vadd.f32 %v816, %v857
        %v861 = vadd.f32 %v817, %v857
        %v862 = vadd.f32 %v818, %v857
        %v863 = vadd.f32 %v819, %v857
        %v864 = vadd.f32 %v820, %v857
        %v865 = vadd.f32 %v821, %v857
        %s866 = scalar_lea.vmem %s217, 128 [#allocation2]
        %867 = vst [vmem:[%s866] sm:$0xff] %v858
        %868 = vst [vmem:[%s866 + $0x8] sm:$0xff] %v859
        %869 = vst [vmem:[%s866 + $0x10] sm:$0xff] %v860
        %870 = vst [vmem:[%s866 + $0x18] sm:$0xff] %v861
        %871 = vst [vmem:[%s866 + $0x20] sm:$0xff] %v862
        %872 = vst [vmem:[%s866 + $0x28] sm:$0xff] %v863
        %873 = vst [vmem:[%s866 + $0x30] sm:$0xff] %v864
        %874 = vst [vmem:[%s866 + $0x38] sm:$0xff] %v865
        %s875 = sand.u32 %s137, 1
        %s876 = scalar_lea.sflag [#allocation3], %s875
        %s877 = sand.u32 %s137, 1
        %s878 = smul.addr %s877, 192
        %s879 = scalar_lea.vmem [#allocation2], %s878
        // Predicated region
        $region41: #{tpu_custom_call.1} parent=39 // pred_check
          %p880 = pneg %p147
        $region42: #{tpu_custom_call.1} parent=39 // pred_check_branch
          %882 = sbr.rel (%p880) target = $region44
        $region43: #{tpu_custom_call.1} parent=39 // pred_region
          #allocation5 [shape = 'u32[6]{0}', space=smem, size = 0x18, scoped, tag = 'DMA stride descriptor']
          %884 = vsyncadd %s876, 0
          %s885 = smul.addr %s19, 8
          %s886 = smul.addr %s885, 8
          %s887 = scalar_lea.hbm %s5, %s886
          %s889 = sshll.u32 1, 14
          %s890 = sxor.u32 4294967295, %s889
          %s893 = sshll.u32 7, 18
          %s894 = sxor.u32 4294967295, %s893
          %s895 = sand.u32 0, %s894
          %s897 = sor.u32 %s895, 0
          %s898 = sshll.u32 %s879, 4
          %s899 = int_to_ptr.vmem [resolvable:$true] %s898
          %s900 = sshll.u32 %s887, 4
          %s901 = int_to_ptr.hbm [resolvable:$true] %s900
          %907 = sst [smem:[#allocation5]] 1024
          %s908 = scalar_lea.smem [#allocation5], 1
          %909 = sst [smem:[%s908]] 2048
          %s910 = scalar_lea.smem [#allocation5], 2
          %911 = sst [smem:[%s910]] 8
          %s912 = scalar_lea.smem [#allocation5], 3
          %913 = sst [smem:[%s912]] 128
          %s914 = scalar_lea.smem [#allocation5], 4
          %915 = sst [smem:[%s914]] 128
          %s916 = scalar_lea.smem [#allocation5], 5
          %917 = sst [smem:[%s916]] 8
          %919 = dma.general %s899, 3072, %s901, %s876, [#allocation4], [#allocation5], %s897, 0
        $region44: #{tpu_custom_call.1} parent=39 // pred_fallthru
          _
      $region40: #{tpu_custom_call.1} parent=5 // pred_fallthru
        _
      %p920 = scmp.le.s32.totalorder 2, %s14
      // Predicated region
      $region45: #{tpu_custom_call.1} parent=5 // pred_check
        %p921 = pneg %p920
      $region46: #{tpu_custom_call.1} parent=5 // pred_check_branch
        %923 = sbr.rel (%p921) target = $region48
      $region47: #{tpu_custom_call.1} parent=5 // pred_region
        %s924 = ssub.s32 %s14, 2
        // Predicated region
        $region49: #{tpu_custom_call.1} parent=47 // pred_check
          %p925 = pneg %p153
        $region50: #{tpu_custom_call.1} parent=47 // pred_check_branch
          %927 = sbr.rel (%p925) target = $region52
        $region51: #{tpu_custom_call.1} parent=47 // pred_region
          %s928 = sand.u32 %s138, 1
          %s929 = scalar_lea.sflag [#allocation3], %s928
          %s930 = sand.u32 %s138, 1
          %s931 = smul.addr %s930, 192
          %s932 = scalar_lea.vmem [#allocation2], %s931
          %934 = dma.done %s929, 3072
        $region52: #{tpu_custom_call.1} parent=47 // pred_fallthru
          _
      $region48: #{tpu_custom_call.1} parent=5 // pred_fallthru
        _
    $region6: #{tpu_custom_call.1} parent=1 // loop_footer
      %s18 = sadd.s32 1, %s14
    $region7: #{tpu_custom_call.1} parent=1 // loop_footer_branch
      %13 = sbr.rel target = $region3
    $region8: #{tpu_custom_call.1} parent=1 // loop_exit
      _
    %935 = vsyncpa [#allocation3], 1
    %s936 = scalar_lea.sflag [#allocation3], 1
    %937 = vsyncpa %s936, 1

</llo_original>
